<compile_context>
chip_gen: v6e
topology: v6e:2x2x1
jax: 0.10.0
libtpu: 0.0.40
codegen_flags: <defaults>
</compile_context>

<pallas_src>
import jax
import jax.numpy as jnp
from jax.experimental import pallas as pl
from jax.experimental.pallas import tpu as pltpu

_BLOCK_ELEMS = 256 * 1024      # 1 MiB of f32 per block
_SMALL_N = 64 * 1024           # below this, a single fused XLA pass wins


def _round_up(v: int, m: int) -> int:
    return ((v + m - 1) // m) * m


def _grid_semantics():
    """CORE_PARALLEL only where there are 2 TCs to split the grid (v7x)."""
    try:
        kind = jax.devices()[0].device_kind.lower()
    except Exception:
        kind = ""
    if "v7" in kind or "7x" in kind:
        return (pltpu.CORE_PARALLEL,)
    return (pltpu.PARALLEL,)


def _affine_kernel(w_ref, b_ref, x_ref, o_ref):
    # w_ref, b_ref: (1,) scalars in SMEM; x_ref / o_ref: (1, block) VMEM tiles.
    w = w_ref[0]
    b = b_ref[0]
    o_ref[...] = (x_ref[...].astype(jnp.float32) * w + b).astype(o_ref.dtype)


def linear_regression_forward(x, weight, bias, *, block_elems=_BLOCK_ELEMS,
                              small_n_threshold=_SMALL_N):
    """y = x @ weight.T + bias, with x: (N, 1), weight: (1, 1), bias: (1,)."""
    n, f = x.shape
    assert f == 1 and weight.shape == (1, 1) and bias.shape == (1,)
    out_dtype = x.dtype

    # Scalars (1-D keeps SMEM padding minimal); compute in f32.
    w = weight.reshape(1).astype(jnp.float32)
    b = bias.reshape(1).astype(jnp.float32)

    # Small-N bypass: pallas_call launch + DMA setup is pure overhead here.
    if n <= small_n_threshold:
        return (x.astype(jnp.float32) * w[0] + b[0]).astype(out_dtype)

    # Lane-dense blocking over the free (1, N) view; ragged last block is
    # handled by Pallas' partial-block DMA clipping (no pad, no slice).
    block_elems = max(128, _round_up(block_elems, 128))
    block_elems = min(block_elems, _round_up(n, 128))
    flat = x.reshape(1, n)                       # same linear layout: free
    grid = (pl.cdiv(n, block_elems),)

    out = pl.pallas_call(
        _affine_kernel,
        out_shape=jax.ShapeDtypeStruct((1, n), out_dtype),
        grid_spec=pltpu.PrefetchScalarGridSpec(
            num_scalar_prefetch=0,
            grid=grid,
            in_specs=[
                pl.BlockSpec(memory_space=pltpu.MemorySpace.SMEM),   # weight
                pl.BlockSpec(memory_space=pltpu.MemorySpace.SMEM),   # bias
                pl.BlockSpec((1, block_elems), lambda i: (0, i)),    # x tile
            ],
            out_specs=pl.BlockSpec((1, block_elems), lambda i: (0, i)),
        ),
        compiler_params=pltpu.CompilerParams(
            dimension_semantics=_grid_semantics(),
            vmem_limit_bytes=48 * 1024 * 1024,   # headroom; expected live ~4 MiB
        ),
    )(w, b, flat)

    return out.reshape(n, 1)                     # same linear layout: free


if __name__ == "__main__":
    key = jax.random.PRNGKey(0)
    kx, kw, kb, kx2 = jax.random.split(key, 4)

    # PyTorch nn.Linear(1, 1) parameter shapes: W (1, 1), b (1,)
    weight = jax.random.uniform(kw, (1, 1), dtype=jnp.float32, minval=-1.0, maxval=1.0)
    bias = jax.random.uniform(kb, (1,), dtype=jnp.float32, minval=-1.0, maxval=1.0)

    # 1) Pallas path: N chosen so the grid has several steps plus a ragged
    #    last block (20000 = 2 * 8192 + 3616) to exercise the masked tail.
    N = 20_000
    x = jax.random.normal(kx, (N, 1), dtype=jnp.float32)
    y = linear_regression_forward(x, weight, bias,
                                  block_elems=8192, small_n_threshold=0)
    y = jax.block_until_ready(y)
    y_ref = x @ weight.T + bias
    assert y.shape == (N, 1)
    assert jnp.allclose(y, y_ref, atol=1e-6, rtol=1e-6)

    # 2) Small-N bypass path (what a tiny regression batch would hit).
    n_small = 1000
    x_small = jax.random.normal(kx2, (n_small, 1), dtype=jnp.float32)
    y_small = jax.block_until_ready(
        linear_regression_forward(x_small, weight, bias))
    assert y_small.shape == (n_small, 1)
    assert jnp.allclose(y_small, x_small @ weight.T + bias, atol=1e-6, rtol=1e-6)

    print("KERNEL_OK")
</pallas_src>

<mosaic_0001>
module attributes {stable_mosaic.version = 11 : i64} {
  func.func @_affine_kernel(%arg0: i32, %arg1: memref<1xf32, #tpu.memory_space<smem>>, %arg2: memref<1xf32, #tpu.memory_space<smem>>, %arg3: memref<1x8192xf32, #tpu.memory_space<vmem>>, %arg4: memref<1x8192xf32, #tpu.memory_space<vmem>>) attributes {dimension_semantics = [#tpu.dimension_semantics<parallel>], iteration_bounds = array<i64: 3>, scalar_prefetch = 0 : i64, scratch_operands = 0 : i64, tpu.core_type = #tpu.core_type<tc>, window_params = [{transform_indices = @transform_0, window_bounds = array<i64: 1>}, {transform_indices = @transform_1, window_bounds = array<i64: 1>}, {transform_indices = @transform_2, window_bounds = array<i64: 1, 8192>}, {transform_indices = @transform_3, window_bounds = array<i64: 1, 8192>}]} {
    %c0 = arith.constant 0 : index
    %0 = memref.load %arg1[%c0] : memref<1xf32, #tpu.memory_space<smem>>
    %c0_0 = arith.constant 0 : index
    %1 = memref.load %arg2[%c0_0] : memref<1xf32, #tpu.memory_space<smem>>
    %c0_1 = arith.constant 0 : index
    %c0_2 = arith.constant 0 : index
    %2 = vector.load %arg3[%c0_1, %c0_2] : memref<1x8192xf32, #tpu.memory_space<vmem>>, vector<1x8192xf32>
    %3 = vector.broadcast %0 : f32 to vector<1x8192xf32>
    %4 = arith.mulf %2, %3 : vector<1x8192xf32>
    %5 = vector.broadcast %1 : f32 to vector<1x8192xf32>
    %6 = arith.addf %4, %5 : vector<1x8192xf32>
    %c0_3 = arith.constant 0 : index
    %c0_4 = arith.constant 0 : index
    %7 = vector.load %arg4[%c0_3, %c0_4] : memref<1x8192xf32, #tpu.memory_space<vmem>>, vector<1x8192xf32>
    tpu.vector_store %arg4[%c0_3, %c0_4], %6 {strides = array<i32>} : memref<1x8192xf32, #tpu.memory_space<vmem>>, vector<1x8192xf32>,
    return
  }
  func.func @transform_0(%arg0: i32) -> i32 {
    %c0_i32 = arith.constant 0 : i32
    %c0_i32_0 = arith.constant 0 : i32
    return %c0_i32 : i32
  }
  func.func @transform_1(%arg0: i32) -> i32 {
    %c0_i32 = arith.constant 0 : i32
    %c0_i32_0 = arith.constant 0 : i32
    return %c0_i32 : i32
  }
  func.func @transform_2(%arg0: i32) -> (i32, i32) {
    %c0_i32 = arith.constant 0 : i32
    %c0_i32_0 = arith.constant 0 : i32
    return %c0_i32, %arg0 : i32, i32
  }
  func.func @transform_3(%arg0: i32) -> (i32, i32) {
    %c0_i32 = arith.constant 0 : i32
    %c0_i32_0 = arith.constant 0 : i32
    return %c0_i32, %arg0 : i32, i32
  }
}

</mosaic_0001>

<llo_original>
// kernel: tpu_custom_call.1
$region0: #{tpu_custom_call.1}
  #allocation0 [shape = 'u32[]', space=smem, size = 0x4, offset = 0x4, fixed_abs, tag = 'smem constant byte address 0x4 - core index']
  #allocation1 [shape = 'u32[144,128]{1,0:T(1,128)}', space=vmem, size = 0x12000, scoped, tag = 'internal scratch']
  #allocation2 [shape = 'f32[1]{0:T(128)S(6)}', space=smem, size = 0x200, scoped, tag = 'scoped memory for tpu_custom_call.1']
  #allocation3 [shape = 'f32[1]{0:T(128)S(6)}', space=smem, size = 0x200, scoped, tag = 'scoped memory for tpu_custom_call.1']
  %s0 = inlined_call_operand.<no memory space> [shape: f32[1], index: 0, kind: input, shape index: {}]
  %s1 = inlined_call_operand.<no memory space> [shape: f32[1], index: 1, kind: input, shape index: {}]
  %s2 = inlined_call_operand.hbm [shape: f32[1,20000], index: 2, kind: input, shape index: {}]
  %s3 = inlined_call_operand.hbm [shape: f32[1,20000], index: 3, kind: output, shape index: {}]
  %s4 = sld [smem:[#allocation0]]
  $region49: #{tpu_custom_call.1} parent=0
    _
  %s6 = ssub.s32 1, %s4
  %s7 = scalar_select 0, %s6, %s4
  %8 = sst [smem:[#allocation2]] %s0
  %9 = sst [smem:[#allocation3]] %s1
  $region1: #{tpu_custom_call.1} parent=0
    #allocation4 [shape = 'u8[65536]{0}', space=vmem, size = 0x10000, scoped, tag = 'input window, operand 2']
    #allocation5 [shape = 's32[2]{0}', space=sflag, size = 0x8, scoped, tag = 'scoped memory for tpu_custom_call.1']
    #allocation6 [shape = 's32[2]{0}', space=sflag, size = 0x8, scoped, tag = 'scoped memory for tpu_custom_call.1']
    #allocation7 [shape = 'u8[65536]{0}', space=vmem, size = 0x10000, scoped, tag = 'output window, operand 0']
    %10 = vsyncpa [#allocation5], 0
    %s11 = scalar_lea.sflag [#allocation5], 1
    %12 = vsyncpa %s11, 0
    %13 = vsyncpa [#allocation6], 0
    %s14 = scalar_lea.sflag [#allocation6], 1
    %15 = vsyncpa %s14, 0
    loop: start=0, step=1, limit=5
    $region2: #{tpu_custom_call.1} parent=1 // loop_pre_header
      _
    $region3: #{tpu_custom_call.1} parent=1 // loop_header
      %s17 = sphi 0, %s21
      %p18 = scmp.ge.s32.totalorder %s17, 5
      %s25 = sphi 0, %s25
      %s27 = sphi 0, %s25
      %s28 = sphi 0, %s27
      %s42 = sphi 0, %s28
      %s46 = sphi 0, %s46
      %s48 = sphi 0, %s46
      %s49 = sphi 0, %s48
      %s63 = sphi 0, %s49
      %s69 = sphi 0, %s71
      %s72 = sphi 0, %s69
      %s73 = sphi 0, %s72
      %s89 = sphi 0, %s73
      %s95 = sphi 0, %s97
      %s98 = sphi 0, %s95
      %s99 = sphi 0, %s98
      %s115 = sphi 0, %s99
    $region4: #{tpu_custom_call.1} parent=1 // loop_header_branch
      %20 = sbr.rel (%p18) target = $region8
    $region5: #{tpu_custom_call.1} parent=1 // loop_body
      %s22 = ssub.s32 %s17, 1
      %s23 = ssub.s32 %s17, 2
      %s24 = sadd.s32 %s17, 1
      %s26 = sadd.s32 %s25, 1
      %p29 = scmp.eq.s32.totalorder %s17, 2
      %p30 = scmp.ne.s32.totalorder %s25, %s27
      %p31 = scmp.eq.s32.totalorder %s17, 0
      %p32 = por %p30, %p31
      %p33 = scmp.ne.s32.totalorder %s25, %s27
      %p34 = scmp.eq.s32.totalorder %s22, 2
      %p35 = por %p33, %p34
      %p36 = scmp.ne.s32.totalorder %s27, %s28
      %p37 = scmp.eq.s32.totalorder %s22, 0
      %p38 = por %p36, %p37
      %p39 = scmp.ne.s32.totalorder %s27, %s28
      %p40 = scmp.eq.s32.totalorder %s23, 2
      %p41 = por %p39, %p40
      %p43 = scmp.ne.s32.totalorder %s28, %s42
      %p44 = scmp.eq.s32.totalorder %s23, 0
      %p45 = por %p43, %p44
      %s47 = sadd.s32 %s46, 1
      %p50 = scmp.eq.s32.totalorder %s17, 2
      %p51 = scmp.ne.s32.totalorder %s46, %s48
      %p52 = scmp.eq.s32.totalorder %s17, 0
      %p53 = por %p51, %p52
      %p54 = scmp.ne.s32.totalorder %s46, %s48
      %p55 = scmp.eq.s32.totalorder %s22, 2
      %p56 = por %p54, %p55
      %p57 = scmp.ne.s32.totalorder %s48, %s49
      %p58 = scmp.eq.s32.totalorder %s22, 0
      %p59 = por %p57, %p58
      %p60 = scmp.ne.s32.totalorder %s48, %s49
      %p61 = scmp.eq.s32.totalorder %s23, 2
      %p62 = por %p60, %p61
      %p64 = scmp.ne.s32.totalorder %s49, %s63
      %p65 = scmp.eq.s32.totalorder %s23, 0
      %p66 = por %p64, %p65
      %s67 = ssub.s32 %s17, %s24
      %p68 = scmp.eq.s32.totalorder %s67, 0
      %s70 = sadd.s32 %s69, 1
      %s71 = scalar_select %p68, %s69, %s70
      %p74 = pneg %p68
      %p75 = scmp.eq.s32.totalorder %s17, 2
      %p76 = por %p74, %p75
      %p77 = scmp.ne.s32.totalorder %s69, %s72
      %p78 = scmp.eq.s32.totalorder %s17, 0
      %p79 = por %p77, %p78
      %p80 = scmp.ne.s32.totalorder %s69, %s72
      %p81 = scmp.eq.s32.totalorder %s22, 2
      %p82 = por %p80, %p81
      %p83 = scmp.ne.s32.totalorder %s72, %s73
      %p84 = scmp.eq.s32.totalorder %s22, 0
      %p85 = por %p83, %p84
      %p86 = scmp.ne.s32.totalorder %s72, %s73
      %p87 = scmp.eq.s32.totalorder %s23, 2
      %p88 = por %p86, %p87
      %p90 = scmp.ne.s32.totalorder %s73, %s89
      %p91 = scmp.eq.s32.totalorder %s23, 0
      %p92 = por %p90, %p91
      %s93 = ssub.s32 %s17, %s24
      %p94 = scmp.eq.s32.totalorder %s93, 0
      %s96 = sadd.s32 %s95, 1
      %s97 = scalar_select %p94, %s95, %s96
      %p100 = pneg %p94
      %p101 = scmp.eq.s32.totalorder %s17, 2
      %p102 = por %p100, %p101
      %p103 = scmp.ne.s32.totalorder %s95, %s98
      %p104 = scmp.eq.s32.totalorder %s17, 0
      %p105 = por %p103, %p104
      %p106 = scmp.ne.s32.totalorder %s95, %s98
      %p107 = scmp.eq.s32.totalorder %s22, 2
      %p108 = por %p106, %p107
      %p109 = scmp.ne.s32.totalorder %s98, %s99
      %p110 = scmp.eq.s32.totalorder %s22, 0
      %p111 = por %p109, %p110
      %p112 = scmp.ne.s32.totalorder %s98, %s99
      %p113 = scmp.eq.s32.totalorder %s23, 2
      %p114 = por %p112, %p113
      %p116 = scmp.ne.s32.totalorder %s99, %s115
      %p117 = scmp.eq.s32.totalorder %s23, 0
      %p118 = por %p116, %p117
      %p119 = scmp.le.s32.totalorder 1, %s17
      %p120 = scmp.lt.s32.totalorder %s17, 4
      %p121 = pnand %p119, %p120
      %p122 = pneg %p121
      // Predicated region
      $region9: #{tpu_custom_call.1} parent=5 // pred_check
        _
      $region10: #{tpu_custom_call.1} parent=5 // pred_check_branch
        %124 = sbr.rel (%p121) target = $region12
      $region11: #{tpu_custom_call.1} parent=5 // pred_region
        %s125 = ssub.s32 %s17, 1
        // Predicated region
        $region13: #{tpu_custom_call.1} parent=11 // pred_check
          %p126 = pneg %p38
        $region14: #{tpu_custom_call.1} parent=11 // pred_check_branch
          %128 = sbr.rel (%p126) target = $region16
        $region15: #{tpu_custom_call.1} parent=11 // pred_region
          _
        $region16: #{tpu_custom_call.1} parent=11 // pred_fallthru
          _
        // Predicated region
        $region17: #{tpu_custom_call.1} parent=11 // pred_check
          %p129 = pneg %p59
        $region18: #{tpu_custom_call.1} parent=11 // pred_check_branch
          %131 = sbr.rel (%p129) target = $region20
        $region19: #{tpu_custom_call.1} parent=11 // pred_region
          _
        $region20: #{tpu_custom_call.1} parent=11 // pred_fallthru
          _
      $region12: #{tpu_custom_call.1} parent=5 // pred_fallthru
        _
      %p132 = scmp.lt.s32.totalorder %s17, 3
      // Predicated region
      $region21: #{tpu_custom_call.1} parent=5 // pred_check
        %p133 = pneg %p132
      $region22: #{tpu_custom_call.1} parent=5 // pred_check_branch
        %135 = sbr.rel (%p133) target = $region24
      $region23: #{tpu_custom_call.1} parent=5 // pred_region
        // Predicated region
        $region25: #{tpu_custom_call.1} parent=23 // pred_check
          %p136 = pneg %p79
        $region26: #{tpu_custom_call.1} parent=23 // pred_check_branch
          %138 = sbr.rel (%p136) target = $region28
        $region27: #{tpu_custom_call.1} parent=23 // pred_region
          %s139 = sand.u32 %s69, 1
          %s140 = scalar_lea.sflag [#allocation5], %s139
          %s141 = sand.u32 %s69, 1
          %s142 = smul.addr %s141, 64
          %s143 = scalar_lea.vmem [#allocation4], %s142
          %s144 = smul.u32 64, %s17
          %s145 = ssub.s32 157, %s144
          %p146 = scmp.lt.s32.totalorder %s145, 64
          %s147 = scalar_select %p146, %s145, 64
          %s148 = smul.u32 16, %s147
          %s150 = ssub.s32 1024, %s148
          %151 = vsyncadd %s140, %s150
          %p152 = scmp.ne.s32.totalorder 0, %s148
          %s153 = smul.addr %s144, 16
          %s154 = scalar_lea.hbm %s2, %s153
          %s155 = sshll.u32 %s147, 4
          %s156 = sshll.u32 %s143, 4
          %s157 = int_to_ptr.vmem [resolvable:$true] %s156
          %159 = dma.hbm_to_vmem [thread:$0]  (%p152), %s154, %s155, %s157, %s140
        $region28: #{tpu_custom_call.1} parent=23 // pred_fallthru
          _
      $region24: #{tpu_custom_call.1} parent=5 // pred_fallthru
        _
      %p160 = scmp.le.s32.totalorder 1, %s17
      %p161 = scmp.lt.s32.totalorder %s17, 4
      %p162 = pnand %p160, %p161
      %p163 = pneg %p162
      // Predicated region
      $region29: #{tpu_custom_call.1} parent=5 // pred_check
        _
      $region30: #{tpu_custom_call.1} parent=5 // pred_check_branch
        %165 = sbr.rel (%p162) target = $region32
      $region31: #{tpu_custom_call.1} parent=5 // pred_region
        %s166 = ssub.s32 %s17, 1
        %s167 = sand.u32 %s72, 1
        %s168 = scalar_lea.sflag [#allocation5], %s167
        %s169 = sand.u32 %s72, 1
        %s170 = smul.addr %s169, 64
        %s171 = scalar_lea.vmem [#allocation4], %s170
        // Predicated region
        $region33: #{tpu_custom_call.1} parent=31 // pred_check
          %p172 = pneg %p85
        $region34: #{tpu_custom_call.1} parent=31 // pred_check_branch
          %174 = sbr.rel (%p172) target = $region36
        $region35: #{tpu_custom_call.1} parent=31 // pred_region
          %175 = dma.done %s168, 1024
        $region36: #{tpu_custom_call.1} parent=31 // pred_fallthru
          _
        %p176 = pneg %p38
        %p177 = pneg %p35
        %p178 = pneg %p59
        %p179 = pneg %p56
        %s180 = sand.u32 %s72, 1
        %s181 = scalar_lea.sflag [#allocation5], %s180
        %s182 = sand.u32 %s72, 1
        %s183 = smul.addr %s182, 64
        %s184 = scalar_lea.vmem [#allocation4], %s183
        %p185 = pneg %p85
        %p186 = pneg %p82
        %p187 = pneg %p111
        %p188 = pneg %p108
        %s189 = sand.u32 %s98, 1
        %s190 = scalar_lea.sflag [#allocation6], %s189
        %s191 = sand.u32 %s98, 1
        %s192 = smul.addr %s191, 64
        %s193 = scalar_lea.vmem [#allocation7], %s192
        %s194 = smul.u32 64, %s22
        %s195 = ssub.s32 157, %s194
        %p196 = scmp.lt.s32.totalorder %s195, 64
        %s197 = scalar_select %p196, %s195, 64
        %s198 = smul.u32 16, %s197
        %s199 = smul.u32 64, %s22
        %s200 = ssub.s32 157, %s199
        %p201 = scmp.lt.s32.totalorder %s200, 64
        %s202 = scalar_select %p201, %s200, 64
        %s203 = smul.u32 16, %s202
        %s204 = sld [smem:[#allocation2]]
        %s205 = sld [smem:[#allocation3]]
        %v206 = vld [vmem:[%s171] sm:$0xff]
        %v207 = vld [vmem:[%s171 + $0x8] sm:$0xff]
        %v208 = vld [vmem:[%s171 + $0x10] sm:$0xff]
        %v209 = vld [vmem:[%s171 + $0x18] sm:$0xff]
        %v210 = vld [vmem:[%s171 + $0x20] sm:$0xff]
        %v211 = vld [vmem:[%s171 + $0x28] sm:$0xff]
        %v212 = vld [vmem:[%s171 + $0x30] sm:$0xff]
        %v213 = vld [vmem:[%s171 + $0x38] sm:$0xff]
        %v214 = vstv %s204
        %v215 = vmul.f32 %v206, %v214
        %v216 = vmul.f32 %v207, %v214
        %v217 = vmul.f32 %v208, %v214
        %v218 = vmul.f32 %v209, %v214
        %v219 = vmul.f32 %v210, %v214
        %v220 = vmul.f32 %v211, %v214
        %v221 = vmul.f32 %v212, %v214
        %v222 = vmul.f32 %v213, %v214
        %v223 = vstv %s205
        %v224 = vadd.f32 %v215, %v223
        %v225 = vadd.f32 %v216, %v223
        %v226 = vadd.f32 %v217, %v223
        %v227 = vadd.f32 %v218, %v223
        %v228 = vadd.f32 %v219, %v223
        %v229 = vadd.f32 %v220, %v223
        %v230 = vadd.f32 %v221, %v223
        %v231 = vadd.f32 %v222, %v223
        %232 = vst [vmem:[%s193] sm:$0xff] %v224
        %233 = vst [vmem:[%s193 + $0x8] sm:$0xff] %v225
        %234 = vst [vmem:[%s193 + $0x10] sm:$0xff] %v226
        %235 = vst [vmem:[%s193 + $0x18] sm:$0xff] %v227
        %236 = vst [vmem:[%s193 + $0x20] sm:$0xff] %v228
        %237 = vst [vmem:[%s193 + $0x28] sm:$0xff] %v229
        %238 = vst [vmem:[%s193 + $0x30] sm:$0xff] %v230
        %239 = vst [vmem:[%s193 + $0x38] sm:$0xff] %v231
        %s240 = sand.u32 %s98, 1
        %s241 = scalar_lea.sflag [#allocation6], %s240
        %s242 = sand.u32 %s98, 1
        %s243 = smul.addr %s242, 64
        %s244 = scalar_lea.vmem [#allocation7], %s243
        // Predicated region
        $region37: #{tpu_custom_call.1} parent=31 // pred_check
          %p245 = pneg %p108
        $region38: #{tpu_custom_call.1} parent=31 // pred_check_branch
          %247 = sbr.rel (%p245) target = $region40
        $region39: #{tpu_custom_call.1} parent=31 // pred_region
          %s248 = smul.u32 64, %s22
          %s249 = ssub.s32 157, %s248
          %p250 = scmp.lt.s32.totalorder %s249, 64
          %s251 = scalar_select %p250, %s249, 64
          %s252 = smul.u32 16, %s251
          %s254 = ssub.s32 1024, %s252
          %255 = vsyncadd %s241, %s254
          %p256 = scmp.ne.s32.totalorder 0, %s252
          %s257 = smul.addr %s248, 16
          %s258 = scalar_lea.hbm %s3, %s257
          %s259 = sshll.u32 %s251, 4
          %s260 = sshll.u32 %s244, 4
          %s261 = int_to_ptr.vmem [resolvable:$true] %s260
          %263 = dma.vmem_to_hbm [thread:$0]  (%p256), %s261, %s259, %s258, %s241
        $region40: #{tpu_custom_call.1} parent=31 // pred_fallthru
          _
      $region32: #{tpu_custom_call.1} parent=5 // pred_fallthru
        _
      %p264 = scmp.le.s32.totalorder 2, %s17
      // Predicated region
      $region41: #{tpu_custom_call.1} parent=5 // pred_check
        %p265 = pneg %p264
      $region42: #{tpu_custom_call.1} parent=5 // pred_check_branch
        %267 = sbr.rel (%p265) target = $region44
      $region43: #{tpu_custom_call.1} parent=5 // pred_region
        %s268 = ssub.s32 %s17, 2
        // Predicated region
        $region45: #{tpu_custom_call.1} parent=43 // pred_check
          %p269 = pneg %p114
        $region46: #{tpu_custom_call.1} parent=43 // pred_check_branch
          %271 = sbr.rel (%p269) target = $region48
        $region47: #{tpu_custom_call.1} parent=43 // pred_region
          %s272 = sand.u32 %s99, 1
          %s273 = scalar_lea.sflag [#allocation6], %s272
          %s274 = sand.u32 %s99, 1
          %s275 = smul.addr %s274, 64
          %s276 = scalar_lea.vmem [#allocation7], %s275
          %277 = dma.done %s273, 1024
        $region48: #{tpu_custom_call.1} parent=43 // pred_fallthru
          _
      $region44: #{tpu_custom_call.1} parent=5 // pred_fallthru
        _
    $region6: #{tpu_custom_call.1} parent=1 // loop_footer
      %s21 = sadd.s32 1, %s17
    $region7: #{tpu_custom_call.1} parent=1 // loop_footer_branch
      %16 = sbr.rel target = $region3
    $region8: #{tpu_custom_call.1} parent=1 // loop_exit
      _
    %278 = vsyncpa [#allocation5], 1
    %s279 = scalar_lea.sflag [#allocation5], 1
    %280 = vsyncpa %s279, 1
    %281 = vsyncpa [#allocation6], 1
    %s282 = scalar_lea.sflag [#allocation6], 1
    %283 = vsyncpa %s282, 1

</llo_original>
